<compile_context>
chip_gen: v7x
topology: tpu7x:2x2x1
jax: 0.10.0
libtpu: 0.0.40
codegen_flags: <defaults>
</compile_context>

<pallas_src>
import functools

import jax
import jax.numpy as jnp
from jax import lax
from jax.experimental import pallas as pl
from jax.experimental.pallas import tpu as pltpu


def _conv_tile(xa_ref, xh_ref, w_ref, *, tap_offsets, tile):
    """One grouped-conv tile via a single folded MXU contraction (f32 accumulate).

    xa_ref: [Cin, tile]        current tile of the flat padded input
    xh_ref: [Cin, HALO]        first HALO lanes of the NEXT tile (3x3 halo source)
    w_ref:  [Cout, K*K*Cin]    tap-major densified grouped-conv weight
    returns [Cout, tile] f32
    """
    xcat = jnp.concatenate([xa_ref[...], xh_ref[...]], axis=1)   # [Cin, tile+HALO]
    # Build the [K*K*Cin, tile] im2col slab in VMEM from lane-shifted views; no K*K
    # duplication ever touches HBM.  (v5e note: this funnels 9*Cin*tile through the
    # single vst slot; at large Cin, consider pltpu.roll / 3 accumulating matmuls.)
    slab = jnp.concatenate([xcat[:, d:d + tile] for d in tap_offsets], axis=0)
    return jnp.dot(w_ref[...], slab, preferred_element_type=jnp.float32)


def _conv_stats_kernel(xa_ref, xh_ref, w_ref, m_ref, stats_ref, *, tap_offsets, tile):
    """Pass 1: per-tile per-channel (sum, sum_of_squares) over valid positions."""
    z = _conv_tile(xa_ref, xh_ref, w_ref, tap_offsets=tap_offsets, tile=tile)
    m = m_ref[...].astype(jnp.float32)                   # [1, tile], exact 0/1 values
    zm = z * m
    s1 = jnp.sum(zm, axis=1, keepdims=True)              # [Cout, 1]
    s2 = jnp.sum(zm * z, axis=1, keepdims=True)          # [Cout, 1]
    stats_ref[...] = jnp.concatenate([s1, s2], axis=1)[None]      # [1, Cout, 2]


def _conv_bn_relu_kernel(xa_ref, xh_ref, w_ref, a_ref, b_ref, o_ref, *, tap_offsets, tile):
    """Pass 2: recompute the conv tile, apply folded BN affine + ReLU, store lane-dense."""
    z = _conv_tile(xa_ref, xh_ref, w_ref, tap_offsets=tap_offsets, tile=tile)
    y = z * a_ref[...] + b_ref[...]
    o_ref[...] = jnp.maximum(y, 0.0).astype(o_ref.dtype)


def conv_block_forward(x_nchw, weight, bias, gamma, beta, *, groups,
                       stride=1, padding=1, eps=1e-5,
                       tile=1024, compute_dtype=jnp.bfloat16):
    assert stride == 1, "ConvBlock default stride=1 is what this kernel implements"
    N, Cin, H, W = x_nchw.shape
    Cout, Cin_g, K, Kw = weight.shape
    assert Kw == K and Cin % groups == 0 and Cin_g == Cin // groups and Cout % groups == 0
    assert gamma.shape == (Cout,) and beta.shape == (Cout,) and bias.shape == (Cout,)
    opg = Cout // groups
    f32 = jnp.float32

    Hp, Wp = H + 2 * padding, W + 2 * padding
    Ho, Wo = Hp - K + 1, Wp - K + 1
    P = N * Hp * Wp                                # flat padded positions
    halo = (K - 1) * Wp + (K - 1)                  # largest tap offset
    HALO = max(128, pl.cdiv(halo, 128) * 128)      # lanes of next-tile halo to fetch
    assert tile % 128 == 0, "tile must be a multiple of 128"
    assert tile % HALO == 0, "tile must be a multiple of the halo block width (raise tile)"

    n_tiles = pl.cdiv(P, tile)
    L_z = n_tiles * tile                           # padded length of the output/mask
    L_x = L_z + HALO                               # + halo lanes so the last tile's halo is in-bounds
    bpt = tile // HALO                             # halo blocks per tile (for the halo index_map)

    # ---------------- glue: layout only (input copied ONCE, cast before moving) --------
    x_cm = jnp.transpose(x_nchw.astype(compute_dtype), (1, 0, 2, 3))       # [Cin, N, H, W]
    x_pad = jnp.pad(x_cm, ((0, 0), (0, 0), (padding, padding), (padding, padding)))
    x_flat = jnp.pad(x_pad.reshape(Cin, P), ((0, 0), (0, L_x - P)))        # [Cin, L_x]

    # validity mask (1 where a conv output pixel lives in the padded frame), compute_dtype
    mvalid = jnp.zeros((N, Hp, Wp), compute_dtype).at[:, :Ho, :Wo].set(1)
    mask = jnp.pad(mvalid.reshape(1, P), ((0, 0), (0, L_z - P)))           # [1, L_z]

    # grouped weight, densified + folded tap-major: [Cout, K*K*Cin]
    w_full = jnp.zeros((K * K, Cout, Cin), f32)
    for g in range(groups):
        wg = weight[g * opg:(g + 1) * opg].astype(f32)                     # [opg, Cin_g, K, K]
        wg = jnp.transpose(wg, (2, 3, 0, 1)).reshape(K * K, opg, Cin_g)
        w_full = w_full.at[:, g * opg:(g + 1) * opg,
                           g * Cin_g:(g + 1) * Cin_g].set(wg)
    w_flat = jnp.transpose(w_full, (1, 0, 2)).reshape(Cout, K * K * Cin).astype(compute_dtype)

    tap_offsets = tuple(kh * Wp + kw for kh in range(K) for kw in range(K))

    # Both passes produce per-tile-independent outputs, so the single grid axis is
    # "parallel" (v7x megacore shards it; no-op on v5e/v6e).  32 MiB VMEM is far above
    # the double-buffered working set (~(2*Cin + Cout)*tile*4B + 9*Cin*tile slab); on
    # v7x (64 MiB physical) re-derive before scaling Cin/tile — the 9x slab grows first.
    cparams = pltpu.CompilerParams(
        dimension_semantics=("parallel",),
        vmem_limit_bytes=32 * 1024 * 1024)

    # ---------------- pass 1: per-tile BN partial stats only (no z writeback) -----------
    kern1 = functools.partial(_conv_stats_kernel, tap_offsets=tap_offsets, tile=tile)
    stats = pl.pallas_call(
        kern1,
        grid=(n_tiles,),
        in_specs=[
            pl.BlockSpec((Cin, tile), lambda j: (0, j)),                 # current tile
            pl.BlockSpec((Cin, HALO), lambda j: (0, (j + 1) * bpt)),     # slim halo of next tile
            pl.BlockSpec((Cout, K * K * Cin), lambda j: (0, 0)),         # folded weight (resident)
            pl.BlockSpec((1, tile), lambda j: (0, j)),                   # validity mask
        ],
        out_specs=pl.BlockSpec((1, Cout, 2), lambda j: (j, 0, 0)),       # per-tile (sum, sumsq)
        out_shape=jax.ShapeDtypeStruct((n_tiles, Cout, 2), f32),
        compiler_params=cparams,
    )(x_flat, x_flat, w_flat, mask)

    # --------- tiny per-channel reduction + BN affine fold (wrapper glue, O(C)) ---------
    # Single-pass E[z^2]-E[z]^2 in f32 with a >=0 clamp; switch to a two-pass/Welford
    # variant if conv outputs are ever badly off-center.
    cnt = float(N * Ho * Wo)
    mean = jnp.sum(stats[:, :, 0], axis=0) / cnt
    var = jnp.maximum(jnp.sum(stats[:, :, 1], axis=0) / cnt - mean * mean, 0.0)
    inv = lax.rsqrt(var + eps)
    a = gamma.astype(f32) * inv
    # Training-mode BN subtracts the per-channel mean of (z + bias), so the conv bias
    # cancels exactly: b = beta - mean_z * a.  `bias` is accepted for module fidelity.
    b = beta.astype(f32) - mean * a

    # ---------------- pass 2: recompute conv tile, relu(z*a + b), lane-dense store ------
    kern2 = functools.partial(_conv_bn_relu_kernel, tap_offsets=tap_offsets, tile=tile)
    out_flat = pl.pallas_call(
        kern2,
        grid=(n_tiles,),
        in_specs=[
            pl.BlockSpec((Cin, tile), lambda j: (0, j)),
            pl.BlockSpec((Cin, HALO), lambda j: (0, (j + 1) * bpt)),
            pl.BlockSpec((Cout, K * K * Cin), lambda j: (0, 0)),
            pl.BlockSpec((Cout, 1), lambda j: (0, 0)),                   # BN scale a
            pl.BlockSpec((Cout, 1), lambda j: (0, 0)),                   # BN shift b
        ],
        out_specs=pl.BlockSpec((Cout, tile), lambda j: (0, j)),
        # f32 output for module fidelity; writing bf16 here would halve the final write.
        out_shape=jax.ShapeDtypeStruct((Cout, L_z), f32),
        compiler_params=cparams,
    )(x_flat, x_flat, w_flat, a.reshape(Cout, 1), b.reshape(Cout, 1))

    # ---------------- glue: crop valid positions back to NCHW ---------------------------
    # (Returning channel-major [Cout, N, H, W] would skip this transpose if callers allow.)
    out = out_flat[:, :P].reshape(Cout, N, Hp, Wp)[:, :, :Ho, :Wo]
    return jnp.transpose(out, (1, 0, 2, 3))


def conv_block_reference(x_nchw, weight, bias, gamma, beta, *, groups,
                         stride=1, padding=1, eps=1e-5):
    # Pure-JAX reference mirroring the PyTorch forward (BatchNorm in training mode).
    # TODO(synk): BatchNorm2d running_mean/running_var buffer updates (training-time
    # side effect) are not modelled; they do not affect the forward output.
    y = lax.conv_general_dilated(
        x_nchw.astype(jnp.float32), weight.astype(jnp.float32),
        window_strides=(stride, stride),
        padding=((padding, padding), (padding, padding)),
        dimension_numbers=("NCHW", "OIHW", "NCHW"),
        feature_group_count=groups,
        precision=lax.Precision.HIGHEST)
    y = y + bias.reshape(1, -1, 1, 1)
    mean = jnp.mean(y, axis=(0, 2, 3), keepdims=True)
    var = jnp.mean((y - mean) ** 2, axis=(0, 2, 3), keepdims=True)
    y = (y - mean) * lax.rsqrt(var + eps)
    y = y * gamma.reshape(1, -1, 1, 1) + beta.reshape(1, -1, 1, 1)
    return jnp.maximum(y, 0.0)


if __name__ == "__main__":
    # Module-consistent small shapes: groups divides in/out channels and
    # out_channels == groups so BatchNorm2d(num_features=groups) is valid.
    N, Cin, H, W = 2, 8, 16, 16
    groups = 4
    Cout = groups
    K, stride, padding = 3, 1, 1

    key = jax.random.PRNGKey(0)
    kx, kw_, kb, kg, kbt, kx2 = jax.random.split(key, 6)
    x = jax.random.normal(kx, (N, Cin, H, W), jnp.float32)
    weight = 0.1 * jax.random.normal(kw_, (Cout, Cin // groups, K, K), jnp.float32)
    bias = 0.1 * jax.random.normal(kb, (Cout,), jnp.float32)
    gamma = 1.0 + 0.1 * jax.random.normal(kg, (groups,), jnp.float32)
    beta = 0.1 * jax.random.normal(kbt, (groups,), jnp.float32)

    # --- Config A: f32 compute, tile=256 so the toy flat length (P=648) still runs a
    # 3-step pipelined grid; tight check against the exact-arithmetic reference.
    # (Production sizes should use the default tile=1024+.)
    ref = jax.block_until_ready(conv_block_reference(
        x, weight, bias, gamma, beta, groups=groups, stride=stride, padding=padding))
    out_f32 = jax.block_until_ready(conv_block_forward(
        x, weight, bias, gamma, beta, groups=groups, stride=stride, padding=padding,
        tile=256, compute_dtype=jnp.float32))
    assert out_f32.shape == (N, Cout, H, W)
    assert bool(jnp.all(jnp.isfinite(out_f32)))
    assert jnp.allclose(out_f32, ref, atol=3e-2, rtol=3e-2), \
        f"f32 max err {float(jnp.max(jnp.abs(out_f32 - ref)))}"

    # --- Config B: bf16 inputs/weights with f32 MXU accumulation (v6e/v7x path) using
    # the default tile=1024; spatial bumped slightly so the default tile still runs a
    # 2-step grid.  Compared against a reference fed bf16-rounded inputs so only the
    # kernel logic (not the dtype choice) is under test.
    N2, H2, W2 = 2, 24, 24
    x2 = jax.random.normal(kx2, (N2, Cin, H2, W2), jnp.float32)
    ref2 = jax.block_until_ready(conv_block_reference(
        x2.astype(jnp.bfloat16).astype(jnp.float32),
        weight.astype(jnp.bfloat16).astype(jnp.float32),
        bias, gamma, beta, groups=groups, stride=stride, padding=padding))
    out_bf16 = jax.block_until_ready(conv_block_forward(
        x2, weight, bias, gamma, beta, groups=groups, stride=stride, padding=padding,
        compute_dtype=jnp.bfloat16))
    assert out_bf16.shape == (N2, Cout, H2, W2)
    assert jnp.allclose(out_bf16, ref2, atol=3e-2, rtol=3e-2), \
        f"bf16 max err {float(jnp.max(jnp.abs(out_bf16 - ref2)))}"

    print("KERNEL_OK")
</pallas_src>

<mosaic_0001>
module attributes {stable_mosaic.version = 11 : i64} {
  func.func @_conv_stats_kernel(%arg0: i32, %arg1: memref<8x256xf32, #tpu.memory_space<vmem>>, %arg2: memref<8x128xf32, #tpu.memory_space<vmem>>, %arg3: memref<4x72xf32, #tpu.memory_space<vmem>>, %arg4: memref<1x256xf32, #tpu.memory_space<vmem>>, %arg5: memref<1x4x2xf32, #tpu.memory_space<vmem>>) attributes {dimension_semantics = [#tpu.dimension_semantics<parallel>], iteration_bounds = array<i64: 3>, scalar_prefetch = 0 : i64, scratch_operands = 0 : i64, tpu.core_type = #tpu.core_type<tc>, window_params = [{transform_indices = @transform_0, window_bounds = array<i64: 8, 256>}, {transform_indices = @transform_1, window_bounds = array<i64: 8, 128>}, {pipeline_mode = #tpu.pipeline_mode<synchronous>, transform_indices = @transform_2, window_bounds = array<i64: 4, 72>}, {transform_indices = @transform_3, window_bounds = array<i64: 1, 256>}, {transform_indices = @transform_4, window_bounds = array<i64: 1, 4, 2>}]} {
    %c0 = arith.constant 0 : index
    %c0_0 = arith.constant 0 : index
    %0 = vector.load %arg1[%c0, %c0_0] : memref<8x256xf32, #tpu.memory_space<vmem>>, vector<8x256xf32>
    %c0_1 = arith.constant 0 : index
    %c0_2 = arith.constant 0 : index
    %1 = vector.load %arg2[%c0_1, %c0_2] : memref<8x128xf32, #tpu.memory_space<vmem>>, vector<8x128xf32>
    %2 = tpu.concatenate %0, %1 in 1 : vector<8x256xf32>, vector<8x128xf32> -> vector<8x384xf32>
    %3 = vector.extract_strided_slice %2 {offsets = [0, 0], sizes = [8, 256], strides = [1, 1]} : vector<8x384xf32> to vector<8x256xf32>
    %4 = vector.extract_strided_slice %2 {offsets = [0, 1], sizes = [8, 256], strides = [1, 1]} : vector<8x384xf32> to vector<8x256xf32>
    %5 = vector.extract_strided_slice %2 {offsets = [0, 2], sizes = [8, 256], strides = [1, 1]} : vector<8x384xf32> to vector<8x256xf32>
    %6 = vector.extract_strided_slice %2 {offsets = [0, 18], sizes = [8, 256], strides = [1, 1]} : vector<8x384xf32> to vector<8x256xf32>
    %7 = vector.extract_strided_slice %2 {offsets = [0, 19], sizes = [8, 256], strides = [1, 1]} : vector<8x384xf32> to vector<8x256xf32>
    %8 = vector.extract_strided_slice %2 {offsets = [0, 20], sizes = [8, 256], strides = [1, 1]} : vector<8x384xf32> to vector<8x256xf32>
    %9 = vector.extract_strided_slice %2 {offsets = [0, 36], sizes = [8, 256], strides = [1, 1]} : vector<8x384xf32> to vector<8x256xf32>
    %10 = vector.extract_strided_slice %2 {offsets = [0, 37], sizes = [8, 256], strides = [1, 1]} : vector<8x384xf32> to vector<8x256xf32>
    %11 = vector.extract_strided_slice %2 {offsets = [0, 38], sizes = [8, 256], strides = [1, 1]} : vector<8x384xf32> to vector<8x256xf32>
    %12 = tpu.concatenate %3, %4, %5, %6, %7, %8, %9, %10, %11 in 0 : vector<8x256xf32>, vector<8x256xf32>, vector<8x256xf32>, vector<8x256xf32>, vector<8x256xf32>, vector<8x256xf32>, vector<8x256xf32>, vector<8x256xf32>, vector<8x256xf32> -> vector<72x256xf32>
    %c0_3 = arith.constant 0 : index
    %c0_4 = arith.constant 0 : index
    %13 = vector.load %arg3[%c0_3, %c0_4] : memref<4x72xf32, #tpu.memory_space<vmem>>, vector<4x72xf32>
    %cst = arith.constant dense<0.000000e+00> : vector<4x256xf32>
    %14 = tpu.matmul %13, %12, %cst {dimension_numbers = #tpu.dot_dimension_numbers<[1], [0], [0], [1], [0, 0, 1, 1], [], []>} : vector<4x72xf32>, vector<72x256xf32>, vector<4x256xf32> -> vector<4x256xf32>
    %c0_5 = arith.constant 0 : index
    %c0_6 = arith.constant 0 : index
    %15 = vector.load %arg4[%c0_5, %c0_6] : memref<1x256xf32, #tpu.memory_space<vmem>>, vector<1x256xf32>
    %16 = vector.broadcast %15 : vector<1x256xf32> to vector<4x256xf32>
    %17 = arith.mulf %14, %16 : vector<4x256xf32>
    %cst_7 = arith.constant dense<0.000000e+00> : vector<4xf32>
    %18 = vector.multi_reduction <add>, %17, %cst_7 [1] : vector<4x256xf32> to vector<4xf32>
    %19 = vector.shape_cast %18 : vector<4xf32> to vector<4x1xf32>
    %20 = arith.mulf %17, %14 : vector<4x256xf32>
    %cst_8 = arith.constant dense<0.000000e+00> : vector<4xf32>
    %21 = vector.multi_reduction <add>, %20, %cst_8 [1] : vector<4x256xf32> to vector<4xf32>
    %22 = vector.shape_cast %21 : vector<4xf32> to vector<4x1xf32>
    %23 = tpu.concatenate %19, %22 in 1 : vector<4x1xf32>, vector<4x1xf32> -> vector<4x2xf32>
    %24 = vector.shape_cast %23 : vector<4x2xf32> to vector<1x4x2xf32>
    %c0_9 = arith.constant 0 : index
    %c0_10 = arith.constant 0 : index
    %c0_11 = arith.constant 0 : index
    %25 = vector.load %arg5[%c0_9, %c0_10, %c0_11] : memref<1x4x2xf32, #tpu.memory_space<vmem>>, vector<1x4x2xf32>
    tpu.vector_store %arg5[%c0_9, %c0_10, %c0_11], %24 {strides = array<i32>} : memref<1x4x2xf32, #tpu.memory_space<vmem>>, vector<1x4x2xf32>,
    return
  }
  func.func @transform_0(%arg0: i32) -> (i32, i32) {
    %c0_i32 = arith.constant 0 : i32
    %c0_i32_0 = arith.constant 0 : i32
    return %c0_i32, %arg0 : i32, i32
  }
  func.func @transform_1(%arg0: i32) -> (i32, i32) {
    %c1_i32 = arith.constant 1 : i32
    %0 = arith.addi %arg0, %c1_i32 : i32
    %c2_i32 = arith.constant 2 : i32
    %1 = arith.muli %0, %c2_i32 : i32
    %c0_i32 = arith.constant 0 : i32
    %c0_i32_0 = arith.constant 0 : i32
    return %c0_i32, %1 : i32, i32
  }
  func.func @transform_2(%arg0: i32) -> (i32, i32) {
    %c0_i32 = arith.constant 0 : i32
    %c0_i32_0 = arith.constant 0 : i32
    %c0_i32_1 = arith.constant 0 : i32
    return %c0_i32, %c0_i32_0 : i32, i32
  }
  func.func @transform_3(%arg0: i32) -> (i32, i32) {
    %c0_i32 = arith.constant 0 : i32
    %c0_i32_0 = arith.constant 0 : i32
    return %c0_i32, %arg0 : i32, i32
  }
  func.func @transform_4(%arg0: i32) -> (i32, i32, i32) {
    %c0_i32 = arith.constant 0 : i32
    %c0_i32_0 = arith.constant 0 : i32
    %c0_i32_1 = arith.constant 0 : i32
    return %arg0, %c0_i32, %c0_i32_0 : i32, i32, i32
  }
}

</mosaic_0001>

<llo_original>
// kernel: tpu_custom_call.1
$region0: #{tpu_custom_call.1}
  #allocation0 [shape = 'u32[]', space=smem, size = 0x4, offset = 0x4, fixed_abs, tag = 'smem constant byte address 0x4 - core index']
  #allocation1 [shape = 'u32[144,128]{1,0:T(1,128)}', space=vmem, size = 0x12000, scoped, tag = 'internal scratch']
  %s0 = inlined_call_operand.hbm [shape: f32[8,896], index: 0, kind: input, shape index: {}]
  %s1 = inlined_call_operand.hbm [shape: f32[8,896], index: 1, kind: input, shape index: {}]
  %s2 = inlined_call_operand.vmem [shape: f32[4,72], index: 2, kind: input, shape index: {}]
  %s3 = inlined_call_operand.vmem [shape: f32[1,768], index: 3, kind: input, shape index: {}]
  %s4 = inlined_call_operand.vmem [shape: f32[3,4,2], index: 4, kind: output, shape index: {}]
  %s5 = sld [smem:[#allocation0]]
  $region57: #{tpu_custom_call.1} parent=0
    _
  %s7 = ssub.s32 1, %s5
  %s8 = scalar_select 0, %s7, %s5
  $region1: #{tpu_custom_call.1} parent=0
    #allocation2 [shape = 'u8[16384]{0}', space=vmem, size = 0x4000, scoped, tag = 'input window, operand 0']
    #allocation3 [shape = 's32[2]{0}', space=sflag, size = 0x8, scoped, tag = 'scoped memory for tpu_custom_call.1']
    #allocation4 [shape = 'u8[8192]{0}', space=vmem, size = 0x2000, scoped, tag = 'input window, operand 1']
    #allocation5 [shape = 's32[2]{0}', space=sflag, size = 0x8, scoped, tag = 'scoped memory for tpu_custom_call.1']
    %9 = vsyncpa [#allocation3], 0
    %s10 = scalar_lea.sflag [#allocation3], 1
    %11 = vsyncpa %s10, 0
    %12 = vsyncpa [#allocation5], 0
    %s13 = scalar_lea.sflag [#allocation5], 1
    %14 = vsyncpa %s13, 0
    loop: start=0, step=1, limit=5
    $region2: #{tpu_custom_call.1} parent=1 // loop_pre_header
      _
    $region3: #{tpu_custom_call.1} parent=1 // loop_header
      %s16 = sphi 0, %s20
      %p17 = scmp.ge.s32.totalorder %s16, 5
      %s26 = sphi 0, %s28
      %s29 = sphi 0, %s26
      %s30 = sphi 0, %s29
      %s46 = sphi 0, %s30
      %s56 = sphi 0, %s58
      %s59 = sphi 0, %s56
      %s60 = sphi 0, %s59
      %s76 = sphi 0, %s60
      %s80 = sphi 0, %s80
      %s82 = sphi 0, %s80
      %s83 = sphi 0, %s82
      %s97 = sphi 0, %s83
      %s103 = sphi 0, %s105
      %s106 = sphi 0, %s103
      %s107 = sphi 0, %s106
      %s123 = sphi 0, %s107
      %s129 = sphi 0, %s131
      %s132 = sphi 0, %s129
      %s133 = sphi 0, %s132
      %s149 = sphi 0, %s133
    $region4: #{tpu_custom_call.1} parent=1 // loop_header_branch
      %19 = sbr.rel (%p17) target = $region8
    $region5: #{tpu_custom_call.1} parent=1 // loop_body
      %s21 = ssub.s32 %s16, 1
      %s22 = ssub.s32 %s16, 2
      %s23 = sadd.s32 %s16, 1
      %s24 = ssub.s32 %s16, %s23
      %p25 = scmp.eq.s32.totalorder %s24, 0
      %s27 = sadd.s32 %s26, 1
      %s28 = scalar_select %p25, %s26, %s27
      %p31 = pneg %p25
      %p32 = scmp.eq.s32.totalorder %s16, 2
      %p33 = por %p31, %p32
      %p34 = scmp.ne.s32.totalorder %s26, %s29
      %p35 = scmp.eq.s32.totalorder %s16, 0
      %p36 = por %p34, %p35
      %p37 = scmp.ne.s32.totalorder %s26, %s29
      %p38 = scmp.eq.s32.totalorder %s21, 2
      %p39 = por %p37, %p38
      %p40 = scmp.ne.s32.totalorder %s29, %s30
      %p41 = scmp.eq.s32.totalorder %s21, 0
      %p42 = por %p40, %p41
      %p43 = scmp.ne.s32.totalorder %s29, %s30
      %p44 = scmp.eq.s32.totalorder %s22, 2
      %p45 = por %p43, %p44
      %p47 = scmp.ne.s32.totalorder %s30, %s46
      %p48 = scmp.eq.s32.totalorder %s22, 0
      %p49 = por %p47, %p48
      %s50 = sadd.s32 %s16, 1
      %s51 = smul.u32 %s50, 2
      %s52 = sadd.s32 %s23, 1
      %s53 = smul.u32 %s52, 2
      %s54 = ssub.s32 %s51, %s53
      %p55 = scmp.eq.s32.totalorder %s54, 0
      %s57 = sadd.s32 %s56, 1
      %s58 = scalar_select %p55, %s56, %s57
      %p61 = pneg %p55
      %p62 = scmp.eq.s32.totalorder %s16, 2
      %p63 = por %p61, %p62
      %p64 = scmp.ne.s32.totalorder %s56, %s59
      %p65 = scmp.eq.s32.totalorder %s16, 0
      %p66 = por %p64, %p65
      %p67 = scmp.ne.s32.totalorder %s56, %s59
      %p68 = scmp.eq.s32.totalorder %s21, 2
      %p69 = por %p67, %p68
      %p70 = scmp.ne.s32.totalorder %s59, %s60
      %p71 = scmp.eq.s32.totalorder %s21, 0
      %p72 = por %p70, %p71
      %p73 = scmp.ne.s32.totalorder %s59, %s60
      %p74 = scmp.eq.s32.totalorder %s22, 2
      %p75 = por %p73, %p74
      %p77 = scmp.ne.s32.totalorder %s60, %s76
      %p78 = scmp.eq.s32.totalorder %s22, 0
      %p79 = por %p77, %p78
      %s81 = sadd.s32 %s80, 1
      %p84 = scmp.eq.s32.totalorder %s16, 2
      %p85 = scmp.ne.s32.totalorder %s80, %s82
      %p86 = scmp.eq.s32.totalorder %s16, 0
      %p87 = por %p85, %p86
      %p88 = scmp.ne.s32.totalorder %s80, %s82
      %p89 = scmp.eq.s32.totalorder %s21, 2
      %p90 = por %p88, %p89
      %p91 = scmp.ne.s32.totalorder %s82, %s83
      %p92 = scmp.eq.s32.totalorder %s21, 0
      %p93 = por %p91, %p92
      %p94 = scmp.ne.s32.totalorder %s82, %s83
      %p95 = scmp.eq.s32.totalorder %s22, 2
      %p96 = por %p94, %p95
      %p98 = scmp.ne.s32.totalorder %s83, %s97
      %p99 = scmp.eq.s32.totalorder %s22, 0
      %p100 = por %p98, %p99
      %s101 = ssub.s32 %s16, %s23
      %p102 = scmp.eq.s32.totalorder %s101, 0
      %s104 = sadd.s32 %s103, 1
      %s105 = scalar_select %p102, %s103, %s104
      %p108 = pneg %p102
      %p109 = scmp.eq.s32.totalorder %s16, 2
      %p110 = por %p108, %p109
      %p111 = scmp.ne.s32.totalorder %s103, %s106
      %p112 = scmp.eq.s32.totalorder %s16, 0
      %p113 = por %p111, %p112
      %p114 = scmp.ne.s32.totalorder %s103, %s106
      %p115 = scmp.eq.s32.totalorder %s21, 2
      %p116 = por %p114, %p115
      %p117 = scmp.ne.s32.totalorder %s106, %s107
      %p118 = scmp.eq.s32.totalorder %s21, 0
      %p119 = por %p117, %p118
      %p120 = scmp.ne.s32.totalorder %s106, %s107
      %p121 = scmp.eq.s32.totalorder %s22, 2
      %p122 = por %p120, %p121
      %p124 = scmp.ne.s32.totalorder %s107, %s123
      %p125 = scmp.eq.s32.totalorder %s22, 0
      %p126 = por %p124, %p125
      %s127 = ssub.s32 %s16, %s23
      %p128 = scmp.eq.s32.totalorder %s127, 0
      %s130 = sadd.s32 %s129, 1
      %s131 = scalar_select %p128, %s129, %s130
      %p134 = pneg %p128
      %p135 = scmp.eq.s32.totalorder %s16, 2
      %p136 = por %p134, %p135
      %p137 = scmp.ne.s32.totalorder %s129, %s132
      %p138 = scmp.eq.s32.totalorder %s16, 0
      %p139 = por %p137, %p138
      %p140 = scmp.ne.s32.totalorder %s129, %s132
      %p141 = scmp.eq.s32.totalorder %s21, 2
      %p142 = por %p140, %p141
      %p143 = scmp.ne.s32.totalorder %s132, %s133
      %p144 = scmp.eq.s32.totalorder %s21, 0
      %p145 = por %p143, %p144
      %p146 = scmp.ne.s32.totalorder %s132, %s133
      %p147 = scmp.eq.s32.totalorder %s22, 2
      %p148 = por %p146, %p147
      %p150 = scmp.ne.s32.totalorder %s133, %s149
      %p151 = scmp.eq.s32.totalorder %s22, 0
      %p152 = por %p150, %p151
      %p153 = scmp.le.s32.totalorder 1, %s16
      %p154 = scmp.lt.s32.totalorder %s16, 4
      %p155 = pnand %p153, %p154
      %p156 = pneg %p155
      // Predicated region
      $region9: #{tpu_custom_call.1} parent=5 // pred_check
        _
      $region10: #{tpu_custom_call.1} parent=5 // pred_check_branch
        %158 = sbr.rel (%p155) target = $region12
      $region11: #{tpu_custom_call.1} parent=5 // pred_region
        %s159 = ssub.s32 %s16, 1
        // Predicated region
        $region13: #{tpu_custom_call.1} parent=11 // pred_check
          %p160 = pneg %p93
        $region14: #{tpu_custom_call.1} parent=11 // pred_check_branch
          %162 = sbr.rel (%p160) target = $region16
        $region15: #{tpu_custom_call.1} parent=11 // pred_region
          _
        $region16: #{tpu_custom_call.1} parent=11 // pred_fallthru
          _
      $region12: #{tpu_custom_call.1} parent=5 // pred_fallthru
        _
      %p163 = scmp.lt.s32.totalorder %s16, 3
      // Predicated region
      $region17: #{tpu_custom_call.1} parent=5 // pred_check
        %p164 = pneg %p163
      $region18: #{tpu_custom_call.1} parent=5 // pred_check_branch
        %166 = sbr.rel (%p164) target = $region20
      $region19: #{tpu_custom_call.1} parent=5 // pred_region
        // Predicated region
        $region21: #{tpu_custom_call.1} parent=19 // pred_check
          %p167 = pneg %p36
        $region22: #{tpu_custom_call.1} parent=19 // pred_check_branch
          %169 = sbr.rel (%p167) target = $region24
        $region23: #{tpu_custom_call.1} parent=19 // pred_region
          %s170 = sand.u32 %s26, 1
          %s171 = scalar_lea.sflag [#allocation3], %s170
          %s172 = sand.u32 %s26, 1
          %s173 = smul.addr %s172, 16
          %s174 = scalar_lea.vmem [#allocation2], %s173
          %s175 = smul.u32 2, %s16
          %s176 = ssub.s32 7, %s175
          %p177 = scmp.lt.s32.totalorder %s176, 2
          %s178 = scalar_select %p177, %s176, 2
          %s179 = smul.u32 128, %s178
          %s181 = ssub.s32 256, %s179
          %182 = vsyncadd %s171, %s181
          %p183 = scmp.ne.s32.totalorder 0, %s179
          %s184 = smul.addr %s175, 128
          %s185 = scalar_lea.hbm %s0, %s184
          %s186 = smul.u32 %s178, 8
          %s187 = sshll.u32 %s186, 4
          %s188 = sshll.u32 %s174, 4
          %s189 = int_to_ptr.vmem [resolvable:$true] %s188
          %191 = dma.hbm_to_vmem [thread:$0]  (%p183), %s185, %s187, %s189, %s171
        $region24: #{tpu_custom_call.1} parent=19 // pred_fallthru
          _
        // Predicated region
        $region25: #{tpu_custom_call.1} parent=19 // pred_check
          %p192 = pneg %p66
        $region26: #{tpu_custom_call.1} parent=19 // pred_check_branch
          %194 = sbr.rel (%p192) target = $region28
        $region27: #{tpu_custom_call.1} parent=19 // pred_region
          %s195 = sand.u32 %s56, 1
          %s196 = scalar_lea.sflag [#allocation5], %s195
          %s197 = sand.u32 %s56, 1
          %s198 = smul.addr %s197, 8
          %s199 = scalar_lea.vmem [#allocation4], %s198
          %s200 = sadd.s32 %s16, 1
          %s201 = smul.u32 %s200, 2
          %s203 = ssub.s32 128, 128
          %204 = vsyncadd %s196, %s203
          %s205 = smul.addr %s201, 128
          %s206 = scalar_lea.hbm %s1, %s205
          %s208 = sshll.u32 %s199, 4
          %s209 = int_to_ptr.vmem [resolvable:$true] %s208
          %211 = dma.hbm_to_vmem [thread:$0]  %s206, 128, %s209, %s196
        $region28: #{tpu_custom_call.1} parent=19 // pred_fallthru
          _
        // Predicated region
        $region29: #{tpu_custom_call.1} parent=19 // pred_check
          %p212 = pneg %p113
        $region30: #{tpu_custom_call.1} parent=19 // pred_check_branch
          %214 = sbr.rel (%p212) target = $region32
        $region31: #{tpu_custom_call.1} parent=19 // pred_region
          %s215 = smul.u32 2, %s16
          %p216 = scmp.lt.s32.totalorder %s215, 5
          %s217 = scalar_select %p216, %s215, 5
          %s218 = scalar_lea.vmem %s3, %s217
          %s219 = smul.u32 2, %s16
        $region32: #{tpu_custom_call.1} parent=19 // pred_fallthru
          _
      $region20: #{tpu_custom_call.1} parent=5 // pred_fallthru
        _
      %p220 = scmp.le.s32.totalorder 1, %s16
      %p221 = scmp.lt.s32.totalorder %s16, 4
      %p222 = pnand %p220, %p221
      %p223 = pneg %p222
      // Predicated region
      $region33: #{tpu_custom_call.1} parent=5 // pred_check
        _
      $region34: #{tpu_custom_call.1} parent=5 // pred_check_branch
        %225 = sbr.rel (%p222) target = $region36
      $region35: #{tpu_custom_call.1} parent=5 // pred_region
        %s226 = ssub.s32 %s16, 1
        %s227 = sand.u32 %s29, 1
        %s228 = scalar_lea.sflag [#allocation3], %s227
        %s229 = sand.u32 %s29, 1
        %s230 = smul.addr %s229, 16
        %s231 = scalar_lea.vmem [#allocation2], %s230
        // Predicated region
        $region37: #{tpu_custom_call.1} parent=35 // pred_check
          %p232 = pneg %p42
        $region38: #{tpu_custom_call.1} parent=35 // pred_check_branch
          %234 = sbr.rel (%p232) target = $region40
        $region39: #{tpu_custom_call.1} parent=35 // pred_region
          %235 = dma.done %s228, 256
        $region40: #{tpu_custom_call.1} parent=35 // pred_fallthru
          _
        %s236 = sand.u32 %s59, 1
        %s237 = scalar_lea.sflag [#allocation5], %s236
        %s238 = sand.u32 %s59, 1
        %s239 = smul.addr %s238, 8
        %s240 = scalar_lea.vmem [#allocation4], %s239
        // Predicated region
        $region41: #{tpu_custom_call.1} parent=35 // pred_check
          %p241 = pneg %p72
        $region42: #{tpu_custom_call.1} parent=35 // pred_check_branch
          %243 = sbr.rel (%p241) target = $region44
        $region43: #{tpu_custom_call.1} parent=35 // pred_region
          %244 = dma.done %s237, 128
        $region44: #{tpu_custom_call.1} parent=35 // pred_fallthru
          _
        %s245 = sand.u32 %s29, 1
        %s246 = scalar_lea.sflag [#allocation3], %s245
        %s247 = sand.u32 %s29, 1
        %s248 = smul.addr %s247, 16
        %s249 = scalar_lea.vmem [#allocation2], %s248
        %p250 = pneg %p42
        %p251 = pneg %p39
        %s252 = sand.u32 %s59, 1
        %s253 = scalar_lea.sflag [#allocation5], %s252
        %s254 = sand.u32 %s59, 1
        %s255 = smul.addr %s254, 8
        %s256 = scalar_lea.vmem [#allocation4], %s255
        %p257 = pneg %p72
        %p258 = pneg %p69
        %p259 = pneg %p93
        %p260 = pneg %p90
        %s261 = smul.u32 2, %s21
        %p262 = scmp.lt.s32.totalorder %s261, 5
        %s263 = scalar_select %p262, %s261, 5
        %s264 = scalar_lea.vmem %s3, %s263
        %p265 = pneg %p119
        %p266 = pneg %p116
        %p267 = pneg %p145
        %p268 = pneg %p142
        %p269 = scmp.lt.s32.totalorder %s21, 2
        %s270 = scalar_select %p269, %s21, 2
        %s271 = smul.addr %s270, 4
        %s272 = scalar_lea.vmem %s4, %s271
        %s273 = smul.u32 2, %s21
        %s274 = ssub.s32 7, %s273
        %p275 = scmp.lt.s32.totalorder %s274, 2
        %s276 = scalar_select %p275, %s274, 2
        %s277 = smul.u32 128, %s276
        %s278 = sadd.s32 %s21, 1
        %s279 = smul.u32 %s278, 2
        %s280 = smul.u32 2, %s21
        %p281 = scmp.lt.s32.totalorder %s280, 5
        %s282 = scalar_select %p281, %s280, 5
        %s283 = scalar_lea.vmem %s3, %s282
        %s284 = smul.u32 2, %s21
        %p285 = scmp.lt.s32.totalorder %s21, 2
        %s286 = scalar_select %p285, %s21, 2
        %s287 = smul.addr %s286, 4
        %s288 = scalar_lea.vmem %s4, %s287
        %v289 = vld [vmem:[%s231] sm:$0xff]
        %v290 = vld [vmem:[%s231 + $0x8] sm:$0xff]
        %v291 = vld [vmem:[%s240] sm:$0xff]
        %295 = vrot.lane.b32.xlu0 %v289, 127
        %v296 = vpop.permute.xlu0 %295
        %297 = vrot.lane.b32.xlu0 %v290, 127
        %v298 = vpop.permute.xlu0 %297
        %299 = vrot.lane.b32.xlu0 %v291, 127
        %v300 = vpop.permute.xlu0 %299
        %vm301 = vcmask 1039360
        %v302 = vsel %vm301, %v296, %v298
        %v303 = vsel %vm301, %v298, %v300
        %306 = vrot.lane.b32.xlu0 %v289, 126
        %v307 = vpop.permute.xlu0 %306
        %308 = vrot.lane.b32.xlu0 %v290, 126
        %v309 = vpop.permute.xlu0 %308
        %310 = vrot.lane.b32.xlu0 %v291, 126
        %v311 = vpop.permute.xlu0 %310
        %vm312 = vcmask 1031168
        %v313 = vsel %vm312, %v307, %v309
        %v314 = vsel %vm312, %v309, %v311
        %317 = vrot.lane.b32.xlu0 %v289, 110
        %v318 = vpop.permute.xlu0 %317
        %319 = vrot.lane.b32.xlu0 %v290, 110
        %v320 = vpop.permute.xlu0 %319
        %321 = vrot.lane.b32.xlu0 %v291, 110
        %v322 = vpop.permute.xlu0 %321
        %vm323 = vcmask 900096
        %v324 = vsel %vm323, %v318, %v320
        %v325 = vsel %vm323, %v320, %v322
        %328 = vrot.lane.b32.xlu0 %v289, 109
        %v329 = vpop.permute.xlu0 %328
        %330 = vrot.lane.b32.xlu0 %v290, 109
        %v331 = vpop.permute.xlu0 %330
        %332 = vrot.lane.b32.xlu0 %v291, 109
        %v333 = vpop.permute.xlu0 %332
        %vm334 = vcmask 891904
        %v335 = vsel %vm334, %v329, %v331
        %v336 = vsel %vm334, %v331, %v333
        %339 = vrot.lane.b32.xlu0 %v289, 108
        %v340 = vpop.permute.xlu0 %339
        %341 = vrot.lane.b32.xlu0 %v290, 108
        %v342 = vpop.permute.xlu0 %341
        %343 = vrot.lane.b32.xlu0 %v291, 108
        %v344 = vpop.permute.xlu0 %343
        %vm345 = vcmask 883712
        %v346 = vsel %vm345, %v340, %v342
        %v347 = vsel %vm345, %v342, %v344
        %350 = vrot.lane.b32.xlu0 %v289, 92
        %v351 = vpop.permute.xlu0 %350
        %352 = vrot.lane.b32.xlu0 %v290, 92
        %v353 = vpop.permute.xlu0 %352
        %354 = vrot.lane.b32.xlu0 %v291, 92
        %v355 = vpop.permute.xlu0 %354
        %vm356 = vcmask 752640
        %v357 = vsel %vm356, %v351, %v353
        %v358 = vsel %vm356, %v353, %v355
        %361 = vrot.lane.b32.xlu0 %v289, 91
        %v362 = vpop.permute.xlu0 %361
        %363 = vrot.lane.b32.xlu0 %v290, 91
        %v364 = vpop.permute.xlu0 %363
        %365 = vrot.lane.b32.xlu0 %v291, 91
        %v366 = vpop.permute.xlu0 %365
        %vm367 = vcmask 744448
        %v368 = vsel %vm367, %v362, %v364
        %v369 = vsel %vm367, %v364, %v366
        %372 = vrot.lane.b32.xlu0 %v289, 90
        %v373 = vpop.permute.xlu0 %372
        %374 = vrot.lane.b32.xlu0 %v290, 90
        %v375 = vpop.permute.xlu0 %374
        %376 = vrot.lane.b32.xlu0 %v291, 90
        %v377 = vpop.permute.xlu0 %376
        %vm378 = vcmask 736256
        %v379 = vsel %vm378, %v373, %v375
        %v380 = vsel %vm378, %v375, %v377
        %v383 = vld [vmem:[%s2] sm:$0xf]
        %vm384 = vcmask 588800
        %v386 = vsel %vm384, %v383, 0
        %388 = vmatprep.subr.mxu0 %v290
        %389 = vmatpush1.msra.mxu0 %v289
        %390 = vmatprep.subr.mxu0 %v303
        %391 = vmatpush1.msra.mxu0 %v302
        %392 = vmatprep.subr.mxu0 %v314
        %393 = vmatpush1.msra.mxu0 %v313
        %394 = vmatprep.subr.mxu0 %v325
        %395 = vmatpush1.msra.mxu0 %v324
        %396 = vmatprep.subr.mxu0 %v336
        %397 = vmatpush1.msra.mxu0 %v335
        %398 = vmatprep.subr.mxu0 %v347
        %399 = vmatpush1.msra.mxu0 %v346
        %400 = vmatprep.subr.mxu0 %v358
        %401 = vmatpush1.msra.mxu0 %v357
        %402 = vmatprep.subr.mxu0 %v369
        %403 = vmatpush1.msra.mxu0 %v368
        %404 = vmatprep.subr.mxu0 %v380
        %405 = vmatpush1.msra.mxu0 %v379
        %406 = vmatprep.subr.mxu0 0.0
        %407 = vmatpush1.msra.mxu0 0.0
        %408 = vmatprep.subr.mxu0 0.0
        %409 = vmatpush1.msra.mxu0 0.0
        %410 = vmatprep.subr.mxu0 0.0
        %411 = vmatpush1.msra.mxu0 0.0
        %412 = vmatprep.subr.mxu0 0.0
        %413 = vmatpush1.msra.mxu0 0.0
        %414 = vmatprep.subr.mxu0 0.0
        %415 = vmatpush1.msra.mxu0 0.0
        %416 = vmatprep.subr.mxu0 0.0
        %417 = vmatpush1.msra.mxu0 0.0
        %418 = vmatprep.subr.mxu0 0.0
        %419 = vmatpush1.msra.mxu0 0.0
        %420 = vmatprep.subr.mxu0 0.0
        %421 = vmatpush1.msra.mxu0 0.0
        %422 = vmatprep.subr.mxu0 0.0
        %423 = vmatpush1.msra.mxu0 0.0
        %424 = vmatprep.subr.mxu0 0.0
        %425 = vmatpush1.msra.mxu0 0.0
        %426 = vmatprep.subr.mxu0 0.0
        %427 = vmatpush1.msra.mxu0 0.0
        %428 = vmatprep.subr.mxu0 0.0
        %429 = vmatpush1.msra.mxu0 0.0
        %430 = vmatprep.subr.mxu0 0.0
        %431 = vmatpush1.msra.mxu0 0.0
        %432 = vmatprep.subr.mxu0 0.0
        %433 = vmatpush1.msra.mxu0 0.0
        %434 = vmatprep.subr.mxu0 0.0
        %435 = vmatpush1.msra.mxu0 0.0
        %436 = vmatprep.subr.mxu0 0.0
        %437 = vmatpush1.msra.mxu0 0.0
        %438 = vmatprep.subr.mxu0 0.0
        %439 = vmatpush1.msra.mxu0 0.0
        %440 = vmatprep.subr.mxu0 0.0
        %441 = vmatpush1.msra.mxu0 0.0
        %442 = vmatprep.subr.mxu0 0.0
        %443 = vmatpush1.msra.mxu0 0.0
        %444 = vmatprep.subr.mxu0 0.0
        %445 = vmatpush1.msra.mxu0 0.0
        %446 = vmatprep.subr.mxu0 0.0
        %447 = vmatpush1.msra.mxu0 0.0
        %448 = vmatprep.subr.mxu0 0.0
        %449 = vmatpush1.msra.mxu0 0.0
        %450 = vmatprep.subr.mxu0 0.0
        %451 = vmatpush1.msra.mxu0 0.0
        %452 = vmatprep.mubr.f32.mxu0 0.0
        %453 = vmatmul.mubr.f32.gmra.mrb[0].mxu0 %v386
        %v454 = vpop.f32.mrb[0].mxu0
        %v455 = vadd.f32 0.0, %v454
        %v456 = vpop.f32.mrb[0].mxu0
        %v457 = vadd.f32 0.0, %v456
        %458 = vdwg.mxu0
        %v459 = vld [vmem:[%s283] sm:$0x3]
        %v461 = vlaneseq
        %v462 = vshrl.u32 %v461, 7
        %v463 = vsub.s32 0, %v462
        %v464 = vrot.slane %v459, %v463
        %v465 = vlaneseq
        %v466 = vshrl.u32 %v465, 7
        %v467 = vsub.s32 1, %v466
        %v468 = vrot.slane %v459, %v467
        %v471 = vmul.f32 %v455, %v464
        %v472 = vmul.f32 %v457, %v468
        %vm473 = vcmask 1043456
        %v474 = vsel %vm473, %v471, 0.0
        %v475 = vsel %vm473, %v472, 0.0
        %v476 = vadd.f32 %v474, %v475
        %477 = vadd.xlane.f32.xlu0 %v476
        %v478 = vpop.xlane.xlu0 %477
        %v479 = vmul.f32 %v471, %v455
        %v480 = vmul.f32 %v472, %v457
        %v481 = vsel %vm473, %v479, 0.0
        %v482 = vsel %vm473, %v480, 0.0
        %v483 = vadd.f32 %v481, %v482
        %484 = vadd.xlane.f32.xlu0 %v483
        %v485 = vpop.xlane.xlu0 %484
        %vm486 = vcmask 7168
        %v487 = vsel %vm486, %v478, %v485
        %vm488 = vcmask 11264
        %489 = vst.msk [vmem:[%s288] sm:$0xf] %vm488, %v487
        %p490 = scmp.lt.s32.totalorder %s21, 2
        %s491 = scalar_select %p490, %s21, 2
        %s492 = smul.addr %s491, 4
        %s493 = scalar_lea.vmem %s4, %s492
        // Predicated region
        $region45: #{tpu_custom_call.1} parent=35 // pred_check
          %p494 = pneg %p142
        $region46: #{tpu_custom_call.1} parent=35 // pred_check_branch
          %496 = sbr.rel (%p494) target = $region48
        $region47: #{tpu_custom_call.1} parent=35 // pred_region
          _
        $region48: #{tpu_custom_call.1} parent=35 // pred_fallthru
          _
      $region36: #{tpu_custom_call.1} parent=5 // pred_fallthru
        _
      %p497 = scmp.le.s32.totalorder 2, %s16
      // Predicated region
      $region49: #{tpu_custom_call.1} parent=5 // pred_check
        %p498 = pneg %p497
      $region50: #{tpu_custom_call.1} parent=5 // pred_check_branch
        %500 = sbr.rel (%p498) target = $region52
      $region51: #{tpu_custom_call.1} parent=5 // pred_region
        %s501 = ssub.s32 %s16, 2
        // Predicated region
        $region53: #{tpu_custom_call.1} parent=51 // pred_check
          %p502 = pneg %p148
        $region54: #{tpu_custom_call.1} parent=51 // pred_check_branch
          %504 = sbr.rel (%p502) target = $region56
        $region55: #{tpu_custom_call.1} parent=51 // pred_region
          %p505 = scmp.lt.s32.totalorder %s22, 2
          %s506 = scalar_select %p505, %s22, 2
          %s507 = smul.addr %s506, 4
          %s508 = scalar_lea.vmem %s4, %s507
        $region56: #{tpu_custom_call.1} parent=51 // pred_fallthru
          _
      $region52: #{tpu_custom_call.1} parent=5 // pred_fallthru
        _
    $region6: #{tpu_custom_call.1} parent=1 // loop_footer
      %s20 = sadd.s32 1, %s16
    $region7: #{tpu_custom_call.1} parent=1 // loop_footer_branch
      %15 = sbr.rel target = $region3
    $region8: #{tpu_custom_call.1} parent=1 // loop_exit
      _
    %509 = vsyncpa [#allocation3], 1
    %s510 = scalar_lea.sflag [#allocation3], 1
    %511 = vsyncpa %s510, 1
    %512 = vsyncpa [#allocation5], 1
    %s513 = scalar_lea.sflag [#allocation5], 1
    %514 = vsyncpa %s513, 1

</llo_original>
